<compile_context>
chip_gen: v7x
topology: tpu7x:2x2x1
jax: 0.10.0
libtpu: 0.0.40
codegen_flags: <defaults>
</compile_context>

<pallas_src>
import functools

import jax
import jax.numpy as jnp
from jax.experimental import pallas as pl
from jax.experimental.pallas import tpu as pltpu


def gt_output_kernel(x_ref, w_ref, params_ref, res_ref, o_ref, *, eps):
    # Dense: x @ W (bf16 operands on the MXU, f32 accumulation).
    h = jnp.dot(x_ref[...], w_ref[...], preferred_element_type=jnp.float32)

    p = params_ref[...].astype(jnp.float32)        # (3, H): bias, gamma, beta
    bias, gamma, beta = p[0:1, :], p[1:2, :], p[2:3, :]

    # TODO(synk): dropout is identity in eval mode (no RNG mask applied here).

    # Bias + residual add in f32.
    y = h + bias + res_ref[...].astype(jnp.float32)

    # LayerNorm over the hidden dimension (f32).
    mean = jnp.mean(y, axis=-1, keepdims=True)
    c = y - mean
    var = jnp.mean(c * c, axis=-1, keepdims=True)
    norm = c * jax.lax.rsqrt(var + eps)
    o_ref[...] = (norm * gamma + beta).astype(o_ref.dtype)


def _pick_block_rows(M, I, H, res_bytes, out_bytes, *, budget_bytes,
                     target_rows=512):
    """Pick a row tile from an explicit VMEM budget (double-buffered blocks)."""
    mm_bytes = 2  # bf16 matmul operands (x, W)
    # W is double-buffered by the pipeline even though its index is constant;
    # params slab is padded to one (8, 128)-word tile.
    fixed = 2 * I * H * mm_bytes + 8 * max(H, 128) * 4
    per_row = 2 * (I * mm_bytes + H * res_bytes + H * out_bytes)
    avail = max(budget_bytes - fixed, 16 * per_row)
    br = min(target_rows, avail // per_row)
    br = max(16, (br // 16) * 16)            # bf16 packs 16 rows per sublane group
    m16 = max(16, ((M + 15) // 16) * 16)     # don't tile past the (padded) input
    return min(br, m16), fixed, per_row


def gt_output(hidden_states, input_tensor, w, b, gamma, beta, *,
              eps=1e-12, block_rows=None,
              vmem_budget_bytes=40 * 1024 * 1024):
    """hidden_states: [B, S, I]; input_tensor: [B, S, H]; w: [I, H] (= torch W.T)."""
    B, S, I = hidden_states.shape
    H = w.shape[1]
    M = B * S

    out_dtype = input_tensor.dtype
    res_bytes = jnp.dtype(input_tensor.dtype).itemsize
    out_bytes = jnp.dtype(out_dtype).itemsize

    auto_rows, fixed_vmem, per_row_vmem = _pick_block_rows(
        M, I, H, res_bytes, out_bytes, budget_bytes=vmem_budget_bytes)
    if block_rows is None:
        block_rows = auto_rows

    # Remainder handling: pad rows so the grid covers M exactly.  Keep the
    # number of row tiles even (when >1) so v7x's 2 TensorCores both get work.
    num_blocks = pl.cdiv(M, block_rows)
    if num_blocks > 1 and num_blocks % 2 == 1:
        num_blocks += 1
    M_pad = num_blocks * block_rows

    x2d = hidden_states.reshape(M, I).astype(jnp.bfloat16)   # bf16 MXU operand
    res2d = input_tensor.reshape(M, H)
    if M_pad != M:
        x2d = jnp.pad(x2d, ((0, M_pad - M), (0, 0)))
        res2d = jnp.pad(res2d, ((0, M_pad - M), (0, 0)))
    w_bf16 = w.astype(jnp.bfloat16)
    # Fused (3, H) parameter slab: one DMA / one VMEM buffer for bias/gamma/beta.
    params = jnp.stack([b.astype(jnp.float32),
                        gamma.astype(jnp.float32),
                        beta.astype(jnp.float32)], axis=0)

    vmem_limit = int(min(48 * 1024 * 1024,
                         max(32 * 1024 * 1024,
                             fixed_vmem + block_rows * per_row_vmem
                             + (8 << 20))))

    cost = pl.CostEstimate(
        flops=2 * M_pad * I * H,
        transcendentals=0,
        bytes_accessed=(x2d.size * 2 + w_bf16.size * 2 + params.size * 4
                        + res2d.size * res_bytes + M_pad * H * out_bytes),
    )

    kernel = functools.partial(gt_output_kernel, eps=eps)

    # TODO(synk): when H < 128 the output stores are lane-masked (only H of 128
    # lanes live); a lane-dense repack of the out block (e.g. (rows/4, 4*H))
    # would help further but needs an in-kernel relayout.
    # TODO(synk): W/params index maps are constant; pl.Buffered(1) pipeline_mode
    # would drop their second pipeline buffer if VMEM ever becomes tight.
    out2d = pl.pallas_call(
        kernel,
        out_shape=jax.ShapeDtypeStruct((M_pad, H), out_dtype),
        grid_spec=pltpu.PrefetchScalarGridSpec(
            num_scalar_prefetch=0,
            grid=(num_blocks,),
            in_specs=[
                pl.BlockSpec((block_rows, I), lambda i: (i, 0)),   # x (bf16)
                pl.BlockSpec((I, H), lambda i: (0, 0)),            # W (bf16)
                pl.BlockSpec((3, H), lambda i: (0, 0)),            # bias/gamma/beta
                pl.BlockSpec((block_rows, H), lambda i: (i, 0)),   # residual
            ],
            out_specs=pl.BlockSpec((block_rows, H), lambda i: (i, 0)),
        ),
        compiler_params=pltpu.CompilerParams(
            dimension_semantics=("parallel",),
            vmem_limit_bytes=vmem_limit),
        cost_estimate=cost,
        # Output reuses the residual's HBM buffer (same shape & dtype).
        input_output_aliases={3: 0},
    )(x2d, w_bf16, params, res2d)

    if M_pad != M:
        out2d = out2d[:M]
    return out2d.reshape(B, S, H)


def _reference(hidden_states, input_tensor, w, b, gamma, beta, *, eps=1e-12,
               matmul_dtype=jnp.bfloat16):
    h = jnp.einsum("bsi,ih->bsh",
                   hidden_states.astype(matmul_dtype),
                   w.astype(matmul_dtype),
                   preferred_element_type=jnp.float32) + b
    y = h + input_tensor.astype(jnp.float32)
    mean = jnp.mean(y, axis=-1, keepdims=True)
    var = jnp.mean((y - mean) ** 2, axis=-1, keepdims=True)
    out = (y - mean) * jax.lax.rsqrt(var + eps) * gamma + beta
    return out.astype(input_tensor.dtype)


if __name__ == "__main__":
    # Config: intermediate_size=64, hidden_size=32, layer_norm_eps=1e-12,
    # hidden_dropout_prob irrelevant in eval.
    eps = 1e-12
    key = jax.random.PRNGKey(0)
    k1, k2, k3, k4 = jax.random.split(key, 4)

    I, H = 64, 32
    w = jax.random.normal(k3, (I, H), dtype=jnp.float32) * 0.02   # [I, H]
    b = jax.random.normal(k4, (H,), dtype=jnp.float32) * 0.02
    gamma = jnp.ones((H,), dtype=jnp.float32)
    beta = jnp.zeros((H,), dtype=jnp.float32)

    # Case 1: M divisible by the row tile.
    # Case 2: ragged M (exercises the padding / remainder path).
    for (B, S) in [(2, 8), (2, 5)]:
        hidden_states = jax.random.normal(k1, (B, S, I), dtype=jnp.float32)
        input_tensor = jax.random.normal(k2, (B, S, H), dtype=jnp.float32)

        out = gt_output(hidden_states, input_tensor, w, b, gamma, beta, eps=eps)
        out = jax.block_until_ready(out)
        assert out.shape == (B, S, H)

        # Precision-matched reference (bf16 matmul operands, f32 accumulate).
        ref_bf16 = _reference(hidden_states, input_tensor, w, b, gamma, beta,
                              eps=eps, matmul_dtype=jnp.bfloat16)
        assert jnp.allclose(out, ref_bf16, atol=1e-4, rtol=1e-4), \
            "mismatch vs bf16-matmul reference"

        # Full-f32 reference with a tolerance appropriate for bf16 operands.
        ref_f32 = _reference(hidden_states, input_tensor, w, b, gamma, beta,
                             eps=eps, matmul_dtype=jnp.float32)
        assert jnp.allclose(out, ref_f32, atol=2e-2, rtol=2e-2), \
            "mismatch vs f32 reference"

    print("KERNEL_OK")
</pallas_src>

<mosaic_0001>
module attributes {stable_mosaic.version = 11 : i64} {
  func.func @gt_output_kernel(%arg0: i32, %arg1: memref<16x64xbf16, #tpu.memory_space<vmem>>, %arg2: memref<64x32xbf16, #tpu.memory_space<vmem>>, %arg3: memref<3x32xf32, #tpu.memory_space<vmem>>, %arg4: memref<16x32xf32, #tpu.memory_space<vmem>>, %arg5: memref<16x32xf32, #tpu.memory_space<vmem>>) attributes {dimension_semantics = [#tpu.dimension_semantics<parallel>], iteration_bounds = array<i64: 1>, scalar_prefetch = 0 : i64, scratch_operands = 0 : i64, tpu.core_type = #tpu.core_type<tc>, window_params = [{transform_indices = @transform_0, window_bounds = array<i64: 16, 64>}, {pipeline_mode = #tpu.pipeline_mode<synchronous>, transform_indices = @transform_1, window_bounds = array<i64: 64, 32>}, {pipeline_mode = #tpu.pipeline_mode<synchronous>, transform_indices = @transform_2, window_bounds = array<i64: 3, 32>}, {transform_indices = @transform_3, window_bounds = array<i64: 16, 32>}, {transform_indices = @transform_4, window_bounds = array<i64: 16, 32>}]} {
    %c0 = arith.constant 0 : index
    %c0_0 = arith.constant 0 : index
    %0 = vector.load %arg1[%c0, %c0_0] : memref<16x64xbf16, #tpu.memory_space<vmem>>, vector<16x64xbf16>
    %c0_1 = arith.constant 0 : index
    %c0_2 = arith.constant 0 : index
    %1 = vector.load %arg2[%c0_1, %c0_2] : memref<64x32xbf16, #tpu.memory_space<vmem>>, vector<64x32xbf16>
    %cst = arith.constant dense<0.000000e+00> : vector<16x32xf32>
    %2 = tpu.matmul %0, %1, %cst {dimension_numbers = #tpu.dot_dimension_numbers<[1], [0], [0], [1], [0, 0, 1, 1], [], []>} : vector<16x64xbf16>, vector<64x32xbf16>, vector<16x32xf32> -> vector<16x32xf32>
    %c0_3 = arith.constant 0 : index
    %c0_4 = arith.constant 0 : index
    %3 = vector.load %arg3[%c0_3, %c0_4] : memref<3x32xf32, #tpu.memory_space<vmem>>, vector<3x32xf32>
    %4 = vector.extract_strided_slice %3 {offsets = [0, 0], sizes = [1, 32], strides = [1, 1]} : vector<3x32xf32> to vector<1x32xf32>
    %5 = vector.extract_strided_slice %3 {offsets = [1, 0], sizes = [1, 32], strides = [1, 1]} : vector<3x32xf32> to vector<1x32xf32>
    %6 = vector.extract_strided_slice %3 {offsets = [2, 0], sizes = [1, 32], strides = [1, 1]} : vector<3x32xf32> to vector<1x32xf32>
    %7 = vector.broadcast %4 : vector<1x32xf32> to vector<16x32xf32>
    %8 = arith.addf %2, %7 : vector<16x32xf32>
    %c0_5 = arith.constant 0 : index
    %c0_6 = arith.constant 0 : index
    %9 = vector.load %arg4[%c0_5, %c0_6] : memref<16x32xf32, #tpu.memory_space<vmem>>, vector<16x32xf32>
    %10 = arith.addf %8, %9 : vector<16x32xf32>
    %cst_7 = arith.constant dense<0.000000e+00> : vector<16xf32>
    %11 = vector.multi_reduction <add>, %10, %cst_7 [1] : vector<16x32xf32> to vector<16xf32>
    %12 = vector.shape_cast %11 : vector<16xf32> to vector<16x1xf32>
    %cst_8 = arith.constant 3.200000e+01 : f32
    %13 = vector.broadcast %cst_8 : f32 to vector<16x1xf32>
    %14 = arith.divf %12, %13 : vector<16x1xf32>
    %15 = vector.broadcast %14 : vector<16x1xf32> to vector<16x32xf32>
    %16 = arith.subf %10, %15 : vector<16x32xf32>
    %17 = arith.mulf %16, %16 : vector<16x32xf32>
    %cst_9 = arith.constant dense<0.000000e+00> : vector<16xf32>
    %18 = vector.multi_reduction <add>, %17, %cst_9 [1] : vector<16x32xf32> to vector<16xf32>
    %19 = vector.shape_cast %18 : vector<16xf32> to vector<16x1xf32>
    %cst_10 = arith.constant 3.200000e+01 : f32
    %20 = vector.broadcast %cst_10 : f32 to vector<16x1xf32>
    %21 = arith.divf %19, %20 : vector<16x1xf32>
    %cst_11 = arith.constant 9.99999996E-13 : f32
    %22 = vector.broadcast %cst_11 : f32 to vector<16x1xf32>
    %23 = arith.addf %21, %22 : vector<16x1xf32>
    %24 = math.rsqrt %23 : vector<16x1xf32>
    %25 = vector.broadcast %24 : vector<16x1xf32> to vector<16x32xf32>
    %26 = arith.mulf %16, %25 : vector<16x32xf32>
    %27 = vector.broadcast %5 : vector<1x32xf32> to vector<16x32xf32>
    %28 = arith.mulf %26, %27 : vector<16x32xf32>
    %29 = vector.broadcast %6 : vector<1x32xf32> to vector<16x32xf32>
    %30 = arith.addf %28, %29 : vector<16x32xf32>
    %c0_12 = arith.constant 0 : index
    %c0_13 = arith.constant 0 : index
    %31 = vector.load %arg5[%c0_12, %c0_13] : memref<16x32xf32, #tpu.memory_space<vmem>>, vector<16x32xf32>
    tpu.vector_store %arg5[%c0_12, %c0_13], %30 {strides = array<i32>} : memref<16x32xf32, #tpu.memory_space<vmem>>, vector<16x32xf32>,
    return
  }
  func.func @transform_0(%arg0: i32) -> (i32, i32) {
    %c0_i32 = arith.constant 0 : i32
    %c0_i32_0 = arith.constant 0 : i32
    return %arg0, %c0_i32 : i32, i32
  }
  func.func @transform_1(%arg0: i32) -> (i32, i32) {
    %c0_i32 = arith.constant 0 : i32
    %c0_i32_0 = arith.constant 0 : i32
    %c0_i32_1 = arith.constant 0 : i32
    return %c0_i32, %c0_i32_0 : i32, i32
  }
  func.func @transform_2(%arg0: i32) -> (i32, i32) {
    %c0_i32 = arith.constant 0 : i32
    %c0_i32_0 = arith.constant 0 : i32
    %c0_i32_1 = arith.constant 0 : i32
    return %c0_i32, %c0_i32_0 : i32, i32
  }
  func.func @transform_3(%arg0: i32) -> (i32, i32) {
    %c0_i32 = arith.constant 0 : i32
    %c0_i32_0 = arith.constant 0 : i32
    return %arg0, %c0_i32 : i32, i32
  }
  func.func @transform_4(%arg0: i32) -> (i32, i32) {
    %c0_i32 = arith.constant 0 : i32
    %c0_i32_0 = arith.constant 0 : i32
    return %arg0, %c0_i32 : i32, i32
  }
}

</mosaic_0001>

<llo_original>
// kernel: tpu_custom_call.1
$region0: #{tpu_custom_call.1}
  #allocation0 [shape = 'u32[]', space=smem, size = 0x4, offset = 0x4, fixed_abs, tag = 'smem constant byte address 0x4 - core index']
  #allocation1 [shape = 'u32[144,128]{1,0:T(1,128)}', space=vmem, size = 0x12000, scoped, tag = 'internal scratch']
  %s0 = inlined_call_operand.vmem [shape: bf16[16,64], index: 0, kind: input, shape index: {}]
  %s1 = inlined_call_operand.vmem [shape: bf16[64,32], index: 1, kind: input, shape index: {}]
  %s2 = inlined_call_operand.vmem [shape: f32[3,32], index: 2, kind: input, shape index: {}]
  %s3 = inlined_call_operand.hbm [shape: f32[16,32], index: 3, kind: input, shape index: {}, may-alias: {3,4}]
  %s4 = inlined_call_operand.hbm [shape: f32[16,32], index: 4, kind: output, shape index: {}, may-alias: {3,4}]
  %s5 = sld [smem:[#allocation0]]
  $region30: #{tpu_custom_call.1} parent=0
    _
  %s7 = ssub.s32 1, %s5
  %s8 = scalar_select 0, %s7, %s5
  $region1: #{tpu_custom_call.1} parent=0
    #allocation2 [shape = 'u8[8192]{0}', space=vmem, size = 0x2000, scoped, tag = 'input window, operand 3, single buffered']
    #allocation3 [shape = 's32[1]{0}', space=sflag, size = 0x4, scoped, tag = 'scoped memory for tpu_custom_call.1']
    #allocation4 [shape = 's32[1]{0}', space=sflag, size = 0x4, scoped, tag = 'scoped memory for tpu_custom_call.1']
    #allocation5 [shape = 'u8[8192]{0}', space=vmem, size = 0x2000, scoped, tag = 'output window, operand 0, single buffered']
    %9 = vsyncpa [#allocation3], 0
    %10 = vsyncpa [#allocation4], 0
    // Predicated region
    $region2: #{tpu_custom_call.1} parent=1 // pred_check
      _
    $region3: #{tpu_custom_call.1} parent=1 // pred_check_branch
      %12 = sbr.rel (0) target = $region5
    $region4: #{tpu_custom_call.1} parent=1 // pred_region
      _
    $region5: #{tpu_custom_call.1} parent=1 // pred_fallthru
      _
    // Predicated region
    $region6: #{tpu_custom_call.1} parent=1 // pred_check
      _
    $region7: #{tpu_custom_call.1} parent=1 // pred_check_branch
      %14 = sbr.rel (0) target = $region9
    $region8: #{tpu_custom_call.1} parent=1 // pred_region
      _
    $region9: #{tpu_custom_call.1} parent=1 // pred_fallthru
      _
    // Predicated region
    $region10: #{tpu_custom_call.1} parent=1 // pred_check
      _
    $region11: #{tpu_custom_call.1} parent=1 // pred_check_branch
      %16 = sbr.rel (0) target = $region13
    $region12: #{tpu_custom_call.1} parent=1 // pred_region
      _
    $region13: #{tpu_custom_call.1} parent=1 // pred_fallthru
      _
    // Predicated region
    $region14: #{tpu_custom_call.1} parent=1 // pred_check
      _
    $region15: #{tpu_custom_call.1} parent=1 // pred_check_branch
      %18 = sbr.rel (0) target = $region17
    $region16: #{tpu_custom_call.1} parent=1 // pred_region
      %s20 = ssub.s32 256, 256
      %21 = vsyncadd [#allocation3], %s20
      %s22 = sshll.u32 [#allocation2], 4
      %s23 = int_to_ptr.vmem [resolvable:$true] %s22
      %28 = dma.hbm_to_vmem [thread:$0]  %s3, 256, %s23, [#allocation3], 128, 128, 8
    $region17: #{tpu_custom_call.1} parent=1 // pred_fallthru
      _
    // Predicated region
    $region18: #{tpu_custom_call.1} parent=1 // pred_check
      _
    $region19: #{tpu_custom_call.1} parent=1 // pred_check_branch
      %30 = sbr.rel (0) target = $region21
    $region20: #{tpu_custom_call.1} parent=1 // pred_region
      %31 = dma.done [#allocation3], 256
    $region21: #{tpu_custom_call.1} parent=1 // pred_fallthru
      _
    %v33 = vld [vmem:[%s0] sm:$0xf]
    %v34 = vld [vmem:[%s0 + $0x4] sm:$0xf]
    %v35 = vld [vmem:[%s1] sm:$0xf]
    %v36 = vld [vmem:[%s1 + $0x4] sm:$0xf]
    %v37 = vld [vmem:[%s1 + $0x8] sm:$0xf]
    %v38 = vld [vmem:[%s1 + $0xc] sm:$0xf]
    %v39 = vld [vmem:[%s1 + $0x10] sm:$0xf]
    %v40 = vld [vmem:[%s1 + $0x14] sm:$0xf]
    %v41 = vld [vmem:[%s1 + $0x18] sm:$0xf]
    %v42 = vld [vmem:[%s1 + $0x1c] sm:$0xf]
    %v43 = vld [vmem:[%s2] sm:$0x7]
    %v44 = vlaneseq
    %v45 = vshrl.u32 %v44, 7
    %v46 = vsub.s32 0, %v45
    %v47 = vrot.slane %v43, %v46
    %v50 = vunpack.c.l.b16 %v33
    %v51 = vunpack.c.l.b16 %v34
    %v52 = vpack.c.b16 %v51, %v50
    %v61 = vunpack.c.l.b16 %v35
    %v62 = vunpack.c.l.b16 %v36
    %v63 = vunpack.c.l.b16 %v37
    %v64 = vunpack.c.l.b16 %v38
    %v65 = vunpack.c.l.b16 %v39
    %v66 = vunpack.c.l.b16 %v40
    %v67 = vunpack.c.l.b16 %v41
    %v68 = vunpack.c.l.b16 %v42
    %v69 = vpack.c.b16 %v62, %v61
    %v70 = vpack.c.b16 %v64, %v63
    %v71 = vpack.c.b16 %v66, %v65
    %v72 = vpack.c.b16 %v68, %v67
    %vm77 = vcmask 523264
    %v79 = vsel %vm77, %v52, 0
    %81 = vmatprep.subr.bf16.mxu0 0
    %82 = vmatpush1.bf16.msra.mxu0 %v69
    %83 = vmatprep.subr.bf16.mxu0 0
    %84 = vmatpush1.bf16.msra.mxu0 %v70
    %85 = vmatprep.subr.bf16.mxu0 0
    %86 = vmatpush1.bf16.msra.mxu0 %v71
    %87 = vmatprep.subr.bf16.mxu0 0
    %88 = vmatpush1.bf16.msra.mxu0 %v72
    %89 = vmatprep.subr.bf16.mxu0 0
    %90 = vmatpush1.bf16.msra.mxu0 0
    %91 = vmatprep.subr.bf16.mxu0 0
    %92 = vmatpush1.bf16.msra.mxu0 0
    %93 = vmatprep.subr.bf16.mxu0 0
    %94 = vmatpush1.bf16.msra.mxu0 0
    %95 = vmatprep.subr.bf16.mxu0 0
    %96 = vmatpush1.bf16.msra.mxu0 0
    %97 = vmatprep.subr.bf16.mxu0 0
    %98 = vmatpush1.bf16.msra.mxu0 0
    %99 = vmatprep.subr.bf16.mxu0 0
    %100 = vmatpush1.bf16.msra.mxu0 0
    %101 = vmatprep.subr.bf16.mxu0 0
    %102 = vmatpush1.bf16.msra.mxu0 0
    %103 = vmatprep.subr.bf16.mxu0 0
    %104 = vmatpush1.bf16.msra.mxu0 0
    %105 = vmatprep.subr.bf16.mxu0 0
    %106 = vmatpush1.bf16.msra.mxu0 0
    %107 = vmatprep.subr.bf16.mxu0 0
    %108 = vmatpush1.bf16.msra.mxu0 0
    %109 = vmatprep.subr.bf16.mxu0 0
    %110 = vmatpush1.bf16.msra.mxu0 0
    %111 = vmatprep.subr.bf16.mxu0 0
    %112 = vmatpush1.bf16.msra.mxu0 0
    %113 = vmatprep.mubr.bf16.mxu0 0
    %114 = vmatmul.mubr.bf16.gmra.mrb[0].mxu0 %v79
    %v115 = vpop.f32.mrb[0].mxu0
    %v116 = vadd.f32 %v47, %v115
    %v117 = vpop.f32.mrb[0].mxu0
    %v118 = vpop.f32.mrb[0].mxu0
    %v119 = vadd.f32 %v47, %v118
    %v120 = vpop.f32.mrb[0].mxu0
    %121 = vdwg.mxu0
    %v122 = vld [vmem:[#allocation2] sm:$0xff]
    %v123 = vld [vmem:[#allocation2 + $0x8] sm:$0xff]
    %v124 = vadd.f32 %v116, %v122
    %v125 = vadd.f32 %v119, %v123
    %vm126 = vcmask 261120
    %v127 = vsel %vm126, %v124, 0.0
    %128 = vadd.xlane.f32.xlu0 %v127
    %v129 = vpop.xlane.xlu0 %128
    %v130 = vsel %vm126, %v125, 0.0
    %131 = vadd.xlane.f32.xlu0 %v130
    %v132 = vpop.xlane.xlu0 %131
    %v133 = vrcp.pop 32.0
    %v134 = vmul.f32 %v129, %v133
    %v135 = vmul.f32 %v132, %v133
    %v136 = vsub.f32 %v124, %v134
    %v137 = vsub.f32 %v125, %v135
    %v138 = vmul.f32 %v136, %v136
    %v139 = vmul.f32 %v137, %v137
    %v140 = vsel %vm126, %v138, 0.0
    %141 = vadd.xlane.f32.xlu0 %v140
    %v142 = vpop.xlane.xlu0 %141
    %v143 = vsel %vm126, %v139, 0.0
    %144 = vadd.xlane.f32.xlu0 %v143
    %v145 = vpop.xlane.xlu0 %144
    %v146 = vmul.f32 %v142, %v133
    %v147 = vmul.f32 %v145, %v133
    %v148 = vadd.f32 %v146, 1e-12
    %v149 = vadd.f32 %v147, 1e-12
    %v150 = vrsqrt.pop %v148
    %v151 = vrsqrt.pop %v149
    %v152 = vmul.f32 %v136, %v150
    %v153 = vmul.f32 %v137, %v151
    %v154 = vlaneseq
    %v155 = vshrl.u32 %v154, 7
    %v156 = vsub.s32 1, %v155
    %v157 = vrot.slane %v43, %v156
    %v158 = vmul.f32 %v152, %v157
    %v159 = vmul.f32 %v153, %v157
    %v160 = vlaneseq
    %v161 = vshrl.u32 %v160, 7
    %v162 = vsub.s32 2, %v161
    %v163 = vrot.slane %v43, %v162
    %v164 = vadd.f32 %v158, %v163
    %v165 = vadd.f32 %v159, %v163
    %166 = vst.msk [vmem:[#allocation5] sm:$0xff] %vm126, %v164
    %167 = vst.msk [vmem:[#allocation5 + $0x8] sm:$0xff] %vm126, %v165
    // Predicated region
    $region22: #{tpu_custom_call.1} parent=1 // pred_check
      _
    $region23: #{tpu_custom_call.1} parent=1 // pred_check_branch
      %169 = sbr.rel (0) target = $region25
    $region24: #{tpu_custom_call.1} parent=1 // pred_region
      %s171 = ssub.s32 256, 256
      %172 = vsyncadd [#allocation4], %s171
      %s173 = sshll.u32 [#allocation5], 4
      %s174 = int_to_ptr.vmem [resolvable:$true] %s173
      %179 = dma.vmem_to_hbm [thread:$0]  %s174, 256, %s4, [#allocation4], 128, 128, 8
    $region25: #{tpu_custom_call.1} parent=1 // pred_fallthru
      _
    // Predicated region
    $region26: #{tpu_custom_call.1} parent=1 // pred_check
      _
    $region27: #{tpu_custom_call.1} parent=1 // pred_check_branch
      %181 = sbr.rel (0) target = $region29
    $region28: #{tpu_custom_call.1} parent=1 // pred_region
      %182 = dma.done [#allocation4], 256
    $region29: #{tpu_custom_call.1} parent=1 // pred_fallthru
      _
    %183 = vsyncpa [#allocation3], 1
    %184 = vsyncpa [#allocation4], 1

</llo_original>
